<compile_context>
chip_gen: v5e
topology: v5e:2x2
jax: 0.10.0
libtpu: 0.0.40
codegen_flags: <defaults>
</compile_context>

<pallas_src>
import functools
import math

import jax
import jax.numpy as jnp
from jax.experimental import pallas as pl
from jax.experimental.pallas import tpu as pltpu


def make_pos_embedding(embedding_size: int, max_len: int = 20) -> jnp.ndarray:
    """Replicates the PyTorch __init__ buffer construction: (max_len, 1, E)."""
    den = jnp.exp(-jnp.arange(0, embedding_size, 2, dtype=jnp.float32)
                  * math.log(10000.0) / embedding_size)                 # (E/2,)
    pos = jnp.arange(0, max_len, dtype=jnp.float32).reshape(max_len, 1)  # (L, 1)
    angles = pos * den                                                   # (L, E/2)
    pe = jnp.zeros((max_len, embedding_size), dtype=jnp.float32)
    pe = pe.at[:, 0::2].set(jnp.sin(angles))
    pe = pe.at[:, 1::2].set(jnp.cos(angles))
    return pe[:, None, :]                                                # (L, 1, E)


# ----------------------------- kernels ------------------------------------- #

def _pe_add_kernel(x_ref, pe_ref, o_ref):
    # x_ref, pe_ref, o_ref: (TILE_S, B*E) lane-dense tiles in VMEM.
    o_ref[...] = (x_ref[...].astype(jnp.float32)
                  + pe_ref[...].astype(jnp.float32)).astype(o_ref.dtype)


def _pe_add_dropout_kernel(x_ref, pe_ref, u_ref, o_ref, *, dropout_p: float):
    # Compute in f32 (cheap everywhere; required path on v5e anyway).
    y = x_ref[...].astype(jnp.float32) + pe_ref[...].astype(jnp.float32)
    keep = u_ref[...] >= jnp.float32(dropout_p)          # P(keep) = 1 - p
    scale = jnp.float32(1.0 / (1.0 - dropout_p))
    y = jnp.where(keep, y * scale, jnp.zeros_like(y))     # inverted dropout (nn.Dropout)
    o_ref[...] = y.astype(o_ref.dtype)


# ----------------------------- wrapper -------------------------------------- #

def _choose_tile_s(S: int, BE: int, n_tensors: int,
                   bytes_per_elem: int = 4,
                   vmem_budget_bytes: int = 8 * 1024 * 1024) -> int:
    """Largest multiple-of-8 row tile s.t. double-buffered tiles fit a conservative
    VMEM budget (sized for v7x: 64 MiB physical / 32 MiB default scoped VMEM)."""
    rows = vmem_budget_bytes // (2 * n_tensors * BE * bytes_per_elem)
    rows = max(8, (rows // 8) * 8)
    return min(S, rows)


def positional_encoding_forward(token_embedding: jnp.ndarray,
                                pos_embedding: jnp.ndarray,
                                *,
                                dropout_p: float,
                                training: bool,
                                rng_key=None) -> jnp.ndarray:
    """token_embedding: (S, B, E); pos_embedding: (max_len, 1, E)."""
    S, B, E = token_embedding.shape
    BE = B * E
    out_dtype = token_embedding.dtype

    apply_dropout = bool(training) and float(dropout_p) > 0.0
    if apply_dropout and float(dropout_p) >= 1.0:
        return jnp.zeros_like(token_embedding)

    # Lane-dense 2D views: last dim = B*E maps fully to lanes.
    x2d = token_embedding.reshape(S, BE)
    pe2d = jnp.broadcast_to(pos_embedding[:S].astype(jnp.float32),
                            (S, B, E)).reshape(S, BE)

    n_tensors = 4 if apply_dropout else 3
    tile_s = _choose_tile_s(S, BE, n_tensors)
    grid = (pl.cdiv(S, tile_s),)
    row_spec = pl.BlockSpec((tile_s, BE), lambda i: (i, 0))

    compiler_params = pltpu.CompilerParams(dimension_semantics=("parallel",))

    if not apply_dropout:
        out2d = pl.pallas_call(
            _pe_add_kernel,
            out_shape=jax.ShapeDtypeStruct((S, BE), out_dtype),
            grid_spec=pltpu.PrefetchScalarGridSpec(
                num_scalar_prefetch=0,
                grid=grid,
                in_specs=[row_spec, row_spec],
                out_specs=row_spec,
            ),
            compiler_params=compiler_params,
            cost_estimate=pl.CostEstimate(
                flops=S * BE,
                transcendentals=0,
                bytes_accessed=3 * S * BE * 4),
        )(x2d, pe2d)
    else:
        if rng_key is None:
            rng_key = jax.random.PRNGKey(0)
        # TODO(synk): drawing the uniforms host-side costs one extra S*B*E f32 HBM read;
        # the in-kernel TPU hardware PRNG (pltpu.prng_seed/prng_random_bits, seeded with
        # program_id per tile) would remove it but has no interpret-mode lowering.
        u = jax.random.uniform(rng_key, (S, BE), dtype=jnp.float32)
        kernel = functools.partial(_pe_add_dropout_kernel,
                                   dropout_p=float(dropout_p))
        out2d = pl.pallas_call(
            kernel,
            out_shape=jax.ShapeDtypeStruct((S, BE), out_dtype),
            grid_spec=pltpu.PrefetchScalarGridSpec(
                num_scalar_prefetch=0,
                grid=grid,
                in_specs=[row_spec, row_spec, row_spec],
                out_specs=row_spec,
            ),
            compiler_params=compiler_params,
            cost_estimate=pl.CostEstimate(
                flops=3 * S * BE,
                transcendentals=0,
                bytes_accessed=4 * S * BE * 4),
        )(x2d, pe2d, u)

    return out2d.reshape(S, B, E)


# ----------------------------- demo / test ----------------------------------- #

if __name__ == "__main__":
    # Small shapes consistent with the module: seq=8, batch=2, embedding=32.
    S, B, E = 8, 2, 32
    MAX_LEN = 20
    DROPOUT = 0.1

    key = jax.random.PRNGKey(0)
    x_key, drop_key = jax.random.split(key)
    token_embedding = jax.random.normal(x_key, (S, B, E), dtype=jnp.float32)
    pos_embedding = make_pos_embedding(E, MAX_LEN)

    ref = token_embedding + pos_embedding[:S]

    # Eval mode: dropout is identity -> exact match against plain-JAX reference.
    out_eval = positional_encoding_forward(
        token_embedding, pos_embedding, dropout_p=DROPOUT, training=False)
    out_eval = jax.block_until_ready(out_eval)
    assert out_eval.shape == (S, B, E)
    assert jnp.allclose(out_eval, ref, atol=1e-5, rtol=1e-5)

    # Training mode: inverted dropout with mask drawn from drop_key.
    out_train = positional_encoding_forward(
        token_embedding, pos_embedding, dropout_p=DROPOUT, training=True,
        rng_key=drop_key)
    out_train = jax.block_until_ready(out_train)
    assert out_train.shape == (S, B, E)

    # Reference using the same uniform draw the wrapper makes.
    u = jax.random.uniform(drop_key, (S, B * E), dtype=jnp.float32).reshape(S, B, E)
    scale = 1.0 / (1.0 - DROPOUT)
    ref_train = jnp.where(u >= DROPOUT, ref * scale, 0.0)
    assert jnp.allclose(out_train, ref_train, atol=1e-5, rtol=1e-5)

    print("KERNEL_OK")
</pallas_src>

<mosaic_0001>
module attributes {stable_mosaic.version = 11 : i64} {
  func.func @_pe_add_kernel(%arg0: i32, %arg1: memref<8x64xf32, #tpu.memory_space<vmem>>, %arg2: memref<8x64xf32, #tpu.memory_space<vmem>>, %arg3: memref<8x64xf32, #tpu.memory_space<vmem>>) attributes {dimension_semantics = [#tpu.dimension_semantics<parallel>], iteration_bounds = array<i64: 1>, scalar_prefetch = 0 : i64, scratch_operands = 0 : i64, tpu.core_type = #tpu.core_type<tc>, window_params = [{transform_indices = @transform_0, window_bounds = array<i64: 8, 64>}, {transform_indices = @transform_1, window_bounds = array<i64: 8, 64>}, {transform_indices = @transform_2, window_bounds = array<i64: 8, 64>}]} {
    %c0 = arith.constant 0 : index
    %c0_0 = arith.constant 0 : index
    %0 = vector.load %arg1[%c0, %c0_0] : memref<8x64xf32, #tpu.memory_space<vmem>>, vector<8x64xf32>
    %c0_1 = arith.constant 0 : index
    %c0_2 = arith.constant 0 : index
    %1 = vector.load %arg2[%c0_1, %c0_2] : memref<8x64xf32, #tpu.memory_space<vmem>>, vector<8x64xf32>
    %2 = arith.addf %0, %1 : vector<8x64xf32>
    %c0_3 = arith.constant 0 : index
    %c0_4 = arith.constant 0 : index
    %3 = vector.load %arg3[%c0_3, %c0_4] : memref<8x64xf32, #tpu.memory_space<vmem>>, vector<8x64xf32>
    tpu.vector_store %arg3[%c0_3, %c0_4], %2 {strides = array<i32>} : memref<8x64xf32, #tpu.memory_space<vmem>>, vector<8x64xf32>,
    return
  }
  func.func @transform_0(%arg0: i32) -> (i32, i32) {
    %c0_i32 = arith.constant 0 : i32
    %c0_i32_0 = arith.constant 0 : i32
    return %arg0, %c0_i32 : i32, i32
  }
  func.func @transform_1(%arg0: i32) -> (i32, i32) {
    %c0_i32 = arith.constant 0 : i32
    %c0_i32_0 = arith.constant 0 : i32
    return %arg0, %c0_i32 : i32, i32
  }
  func.func @transform_2(%arg0: i32) -> (i32, i32) {
    %c0_i32 = arith.constant 0 : i32
    %c0_i32_0 = arith.constant 0 : i32
    return %arg0, %c0_i32 : i32, i32
  }
}

</mosaic_0001>

<llo_original>
// kernel: tpu_custom_call.1
$region0: #{tpu_custom_call.1}
  #allocation0 [shape = 'u32[]', space=smem, size = 0x4, offset = 0x4, fixed_abs, tag = 'smem constant byte address 0x4 - core index']
  #allocation1 [shape = 'u32[72,128]{1,0:T(1,128)}', space=vmem, size = 0x9000, scoped, tag = 'internal scratch']
  %s0 = inlined_call_operand.hbm [shape: f32[8,64], index: 0, kind: input, shape index: {}]
  %s1 = inlined_call_operand.hbm [shape: f32[8,64], index: 1, kind: input, shape index: {}]
  %s2 = inlined_call_operand.hbm [shape: f32[8,64], index: 2, kind: output, shape index: {}]
  %s3 = sld [smem:[#allocation0]]
  $region26: #{tpu_custom_call.1} parent=0
    _
  %s5 = ssub.s32 1, %s3
  %s6 = scalar_select 0, %s5, %s3
  $region1: #{tpu_custom_call.1} parent=0
    #allocation2 [shape = 'u8[4096]{0}', space=vmem, size = 0x1000, scoped, tag = 'input window, operand 0, single buffered']
    #allocation3 [shape = 's32[1]{0}', space=sflag, size = 0x4, scoped, tag = 'scoped memory for tpu_custom_call.1']
    #allocation4 [shape = 's32[1]{0}', space=sflag, size = 0x4, scoped, tag = 'scoped memory for tpu_custom_call.1']
    #allocation5 [shape = 'u8[4096]{0}', space=vmem, size = 0x1000, scoped, tag = 'input window, operand 1, single buffered']
    #allocation6 [shape = 's32[1]{0}', space=sflag, size = 0x4, scoped, tag = 'scoped memory for tpu_custom_call.1']
    #allocation7 [shape = 'u8[4096]{0}', space=vmem, size = 0x1000, scoped, tag = 'output window, operand 0, single buffered']
    %7 = vsyncpa [#allocation3], 0
    %8 = vsyncpa [#allocation6], 0
    %9 = vsyncpa [#allocation4], 0
    // Predicated region
    $region2: #{tpu_custom_call.1} parent=1 // pred_check
      _
    $region3: #{tpu_custom_call.1} parent=1 // pred_check_branch
      %11 = sbr.rel (0) target = $region5
    $region4: #{tpu_custom_call.1} parent=1 // pred_region
      %13 = vsyncadd [#allocation3], 0
      %s15 = sshll.u32 %s0, 4
      %s16 = int_to_ptr.hbm [resolvable:$true] %s15
      %s17 = sshll.u32 [#allocation2], 4
      %s18 = int_to_ptr.vmem [resolvable:$true] %s17
      %20 = dma.hbm_to_vmem [thread:$0]  %s16, 128, %s18, [#allocation3]
    $region5: #{tpu_custom_call.1} parent=1 // pred_fallthru
      _
    // Predicated region
    $region6: #{tpu_custom_call.1} parent=1 // pred_check
      _
    $region7: #{tpu_custom_call.1} parent=1 // pred_check_branch
      %22 = sbr.rel (0) target = $region9
    $region8: #{tpu_custom_call.1} parent=1 // pred_region
      %24 = vsyncadd [#allocation6], 0
      %s26 = sshll.u32 %s1, 4
      %s27 = int_to_ptr.hbm [resolvable:$true] %s26
      %s28 = sshll.u32 [#allocation5], 4
      %s29 = int_to_ptr.vmem [resolvable:$true] %s28
      %31 = dma.hbm_to_vmem [thread:$0]  %s27, 128, %s29, [#allocation6]
    $region9: #{tpu_custom_call.1} parent=1 // pred_fallthru
      _
    // Predicated region
    $region10: #{tpu_custom_call.1} parent=1 // pred_check
      _
    $region11: #{tpu_custom_call.1} parent=1 // pred_check_branch
      %33 = sbr.rel (0) target = $region13
    $region12: #{tpu_custom_call.1} parent=1 // pred_region
      %35 = dma.done [#allocation3], 128
    $region13: #{tpu_custom_call.1} parent=1 // pred_fallthru
      _
    // Predicated region
    $region14: #{tpu_custom_call.1} parent=1 // pred_check
      _
    $region15: #{tpu_custom_call.1} parent=1 // pred_check_branch
      %37 = sbr.rel (0) target = $region17
    $region16: #{tpu_custom_call.1} parent=1 // pred_region
      %39 = dma.done [#allocation6], 128
    $region17: #{tpu_custom_call.1} parent=1 // pred_fallthru
      _
    %v40 = vld [vmem:[#allocation2] sm:$0xff]
    %v41 = vld [vmem:[#allocation5] sm:$0xff]
    %v42 = vadd.f32 %v40, %v41
    %vm43 = vcmask 523264
    %44 = vst.msk [vmem:[#allocation7] sm:$0xff] %vm43, %v42
    // Predicated region
    $region18: #{tpu_custom_call.1} parent=1 // pred_check
      _
    $region19: #{tpu_custom_call.1} parent=1 // pred_check_branch
      %46 = sbr.rel (0) target = $region21
    $region20: #{tpu_custom_call.1} parent=1 // pred_region
      %48 = vsyncadd [#allocation4], 0
      %s50 = sshll.u32 [#allocation7], 4
      %s51 = int_to_ptr.vmem [resolvable:$true] %s50
      %s52 = sshll.u32 %s2, 4
      %s53 = int_to_ptr.hbm [resolvable:$true] %s52
      %55 = dma.vmem_to_hbm [thread:$0]  %s51, 128, %s53, [#allocation4]
    $region21: #{tpu_custom_call.1} parent=1 // pred_fallthru
      _
    // Predicated region
    $region22: #{tpu_custom_call.1} parent=1 // pred_check
      _
    $region23: #{tpu_custom_call.1} parent=1 // pred_check_branch
      %57 = sbr.rel (0) target = $region25
    $region24: #{tpu_custom_call.1} parent=1 // pred_region
      %59 = dma.done [#allocation4], 128
    $region25: #{tpu_custom_call.1} parent=1 // pred_fallthru
      _
    %60 = vsyncpa [#allocation3], 1
    %61 = vsyncpa [#allocation6], 1
    %62 = vsyncpa [#allocation4], 1

</llo_original>
